<compile_context>
chip_gen: v6e
topology: v6e:2x2x1
jax: 0.10.0
libtpu: 0.0.40
codegen_flags: <defaults>
</compile_context>

<pallas_src>
import math

import jax
import jax.numpy as jnp
from jax.experimental import pallas as pl
from jax.experimental.pallas import tpu as pltpu


def _vmem_capacity_bytes():
    """Best-effort physical VMEM query; conservative (v7x, 64 MiB) fallback."""
    try:
        cap = int(pltpu.get_tpu_info().vmem_capacity_bytes)
        if cap > 0:
            return cap
    except Exception:
        pass
    return 64 * 1024 * 1024


# ----------------------------------------------------------------------------------------
# Single-pass kernel: one (Bt, C, HW) block per grid step.
# ----------------------------------------------------------------------------------------
def _csa_single_pass_kernel(x_ref, w1t_ref, w2_ref, wc_ref, o_ref):
    # x_ref  : (Bt, C, HW)  VMEM, native dtype
    # w1t_ref: (C, hid)     VMEM f32  (transposed 1x1-conv weight of the shared MLP)
    # w2_ref : (1, hid)     VMEM f32
    # wc_ref : (2,)         SMEM f32  (spatial 1x1 conv weight: [w_mean, w_max])
    # o_ref  : (Bt, C, HW)
    bt, c, hw = x_ref.shape
    x = x_ref[...]
    w1t = w1t_ref[...]
    w2 = w2_ref[...]

    ones_hw = jnp.ones((bt, 1, hw), x.dtype)    # row vectors -> MXU matvec sums
    ones_c = jnp.ones((bt, 1, c), x.dtype)

    # ---- channel branch: global avg / max pool over HW -> shared MLP -> sigmoid ----
    sum_c = jnp.einsum('bkh,bch->bkc', ones_hw, x,
                       preferred_element_type=jnp.float32)[:, 0, :]       # (Bt, C)
    avg_c = sum_c * jnp.float32(1.0 / hw)
    max_c = jnp.max(x, axis=2).astype(jnp.float32)                        # (Bt, C)

    def mlp(p):                                                           # (Bt, C) -> (Bt, 1)
        hdn = jnp.maximum(jnp.dot(p, w1t, preferred_element_type=jnp.float32), 0.0)
        return jnp.sum(hdn * w2, axis=1, keepdims=True)

    ch = jax.nn.sigmoid(mlp(avg_c) + mlp(max_c))                          # (Bt, 1)

    # ---- spatial branch: per-position mean / max over C -> 1x1 conv -> sigmoid ----
    mean_sp = jnp.einsum('bkc,bch->bkh', ones_c, x,
                         preferred_element_type=jnp.float32) * jnp.float32(1.0 / c)   # (Bt,1,HW)
    max_sp = jnp.max(x, axis=1, keepdims=True).astype(jnp.float32)                    # (Bt,1,HW)
    sp = jax.nn.sigmoid(wc_ref[0] * mean_sp + wc_ref[1] * max_sp)                     # (Bt,1,HW)

    # ---- combine & apply: multiply in f32, single cast at the store ----
    att = ch[:, :, None] * sp                                             # (Bt,1,HW) f32
    o_ref[...] = (x.astype(jnp.float32) * att).astype(o_ref.dtype)


# ----------------------------------------------------------------------------------------
# Two-pass fallback for huge C*HW (v7x 64 MiB VMEM): pass 1 = channel pools, pass 2 = apply.
# ----------------------------------------------------------------------------------------
def _make_pool_kernel(hw_total, hwt):
    need_mask = (hw_total % hwt) != 0

    def kernel(x_ref, sum_ref, max_ref):
        # x_ref: (1, C, hwt); sum_ref / max_ref: (1, 1, C) f32 accumulators (resident over h)
        h = pl.program_id(1)
        x = x_ref[...]
        if need_mask:
            lane = jax.lax.broadcasted_iota(jnp.int32, (1, 1, hwt), 2) + h * hwt
            valid = lane < hw_total
            xs = jnp.where(valid, x, jnp.zeros((), x.dtype))
            xm = jnp.where(valid, x, jnp.full((), -jnp.inf, x.dtype))
        else:
            xs, xm = x, x
        ones_hw = jnp.ones((1, 1, hwt), x.dtype)
        psum = jnp.einsum('bkh,bch->bkc', ones_hw, xs,
                          preferred_element_type=jnp.float32)             # (1,1,C)
        pmax = jnp.max(xm, axis=2)[:, None, :].astype(jnp.float32)        # (1,1,C)

        @pl.when(h == 0)
        def _():
            sum_ref[...] = psum
            max_ref[...] = pmax

        @pl.when(h > 0)
        def _():
            sum_ref[...] = sum_ref[...] + psum
            max_ref[...] = jnp.maximum(max_ref[...], pmax)

    return kernel


def _csa_apply_kernel(x_ref, ch_ref, wc_ref, o_ref):
    # x_ref: (1, C, hwt) VMEM; ch_ref: (B,) SMEM f32; wc_ref: (2,) SMEM f32
    b = pl.program_id(0)
    x = x_ref[...]
    c = x_ref.shape[1]
    ones_c = jnp.ones((1, 1, c), x.dtype)
    mean_sp = jnp.einsum('bkc,bch->bkh', ones_c, x,
                         preferred_element_type=jnp.float32) * jnp.float32(1.0 / c)
    max_sp = jnp.max(x, axis=1, keepdims=True).astype(jnp.float32)
    sp = jax.nn.sigmoid(wc_ref[0] * mean_sp + wc_ref[1] * max_sp)         # (1,1,hwt)
    att = ch_ref[b] * sp
    o_ref[...] = (x.astype(jnp.float32) * att).astype(o_ref.dtype)


# ----------------------------------------------------------------------------------------
# Wrapper
# ----------------------------------------------------------------------------------------
def channel_spatial_attention(x_nchw, w1, w2, wc):
    """x_nchw: (B, C, H, W); w1: (hid, C); w2: (1, hid); wc: (1, 2)."""
    B, C, H, W = x_nchw.shape
    hid = w1.shape[0]
    HW = H * W
    itemsize = jnp.dtype(x_nchw.dtype).itemsize

    x2 = x_nchw.reshape(B, C, HW)                         # no padding, no crop
    w1t = jnp.transpose(w1).astype(jnp.float32)           # (C, hid)
    w2f = w2.reshape(1, hid).astype(jnp.float32)          # (1, hid)
    wc1 = wc.reshape(2).astype(jnp.float32)               # (2,) -> SMEM scalars

    cap = _vmem_capacity_bytes()
    per_b_in = C * HW * itemsize
    per_b_f32 = C * HW * 4
    # live set per batch row: in/out double buffers + f32 temp for the final multiply
    per_b_live = 4 * per_b_in + 2 * per_b_f32
    tgt = min(16 << 20, max(2 << 20, cap // 8))           # per-block byte target

    if per_b_live + (8 << 20) <= cap:
        # ------------------------------ single-pass path ------------------------------
        min_steps = min(B, 4)                             # >=2 TCs (v7x) + pipelining
        bt = max(1, min(B, tgt // max(per_b_in, 1), -(-B // min_steps)))
        while B % bt:                                     # divisor of B -> no ragged tail
            bt -= 1
        nbt = B // bt
        vmem_limit = int(min(cap - (4 << 20),
                             max(32 << 20, bt * per_b_live + (8 << 20))))

        out = pl.pallas_call(
            _csa_single_pass_kernel,
            out_shape=jax.ShapeDtypeStruct((B, C, HW), x_nchw.dtype),
            grid_spec=pltpu.PrefetchScalarGridSpec(
                num_scalar_prefetch=0,
                grid=(nbt,),
                in_specs=[
                    pl.BlockSpec((bt, C, HW), lambda b: (b, 0, 0)),
                    pl.BlockSpec((C, hid), lambda b: (0, 0)),
                    pl.BlockSpec((1, hid), lambda b: (0, 0)),
                    pl.BlockSpec(memory_space=pltpu.MemorySpace.SMEM),
                ],
                out_specs=pl.BlockSpec((bt, C, HW), lambda b: (b, 0, 0)),
            ),
            compiler_params=pltpu.CompilerParams(
                dimension_semantics=("parallel",),
                vmem_limit_bytes=vmem_limit,
            ),
        )(x2, w1t, w2f, wc1)
        return out.reshape(B, C, H, W)

    # ------------------- two-pass HW-tiled fallback (huge C*HW on v7x) -------------------
    lanes = max(1, tgt // max(C * itemsize, 1))
    hwt = max(128, (lanes // 128) * 128)                  # lane-dense tile, multiple of 128
    hwt = int(min(hwt, -(-HW // 128) * 128))
    nhw = -(-HW // hwt)
    blk_in = C * hwt * itemsize
    blk_f32 = C * hwt * 4
    vmem_limit = int(min(cap - (4 << 20),
                         max(32 << 20, 4 * blk_in + 3 * blk_f32 + (8 << 20))))

    # Pass 1: channel sum/max pools accumulated over the "arbitrary" HW axis.
    sums, maxs = pl.pallas_call(
        _make_pool_kernel(HW, hwt),
        out_shape=(jax.ShapeDtypeStruct((B, 1, C), jnp.float32),
                   jax.ShapeDtypeStruct((B, 1, C), jnp.float32)),
        grid_spec=pltpu.PrefetchScalarGridSpec(
            num_scalar_prefetch=0,
            grid=(B, nhw),
            in_specs=[pl.BlockSpec((1, C, hwt), lambda b, h: (b, 0, h))],
            out_specs=(pl.BlockSpec((1, 1, C), lambda b, h: (b, 0, 0)),
                       pl.BlockSpec((1, 1, C), lambda b, h: (b, 0, 0))),
        ),
        compiler_params=pltpu.CompilerParams(
            dimension_semantics=("parallel", "arbitrary"),
            vmem_limit_bytes=vmem_limit,
        ),
    )(x2)

    # Tiny shared MLP + sigmoid on the (B, C) pools: plain XLA (negligible work).
    avg_c = sums[:, 0, :] * (1.0 / HW)
    max_c = maxs[:, 0, :]

    def _mlp(p):
        return jnp.maximum(p @ w1t, 0.0) @ w2f.T          # (B, 1)

    ch = jax.nn.sigmoid(_mlp(avg_c) + _mlp(max_c))[:, 0].astype(jnp.float32)   # (B,)

    # Pass 2: spatial attention + apply, HW-tiled.
    out = pl.pallas_call(
        _csa_apply_kernel,
        out_shape=jax.ShapeDtypeStruct((B, C, HW), x_nchw.dtype),
        grid_spec=pltpu.PrefetchScalarGridSpec(
            num_scalar_prefetch=0,
            grid=(B, nhw),
            in_specs=[
                pl.BlockSpec((1, C, hwt), lambda b, h: (b, 0, h)),
                pl.BlockSpec(memory_space=pltpu.MemorySpace.SMEM),    # ch  (B,)
                pl.BlockSpec(memory_space=pltpu.MemorySpace.SMEM),    # wc  (2,)
            ],
            out_specs=pl.BlockSpec((1, C, hwt), lambda b, h: (b, 0, h)),
        ),
        compiler_params=pltpu.CompilerParams(
            dimension_semantics=("parallel", "parallel"),
            vmem_limit_bytes=vmem_limit,
        ),
    )(x2, ch, wc1)
    return out.reshape(B, C, H, W)


# ----------------------------------------------------------------------------------------
# Pure-JAX reference matching the PyTorch forward.
# ----------------------------------------------------------------------------------------
def _ref_forward(x, w1, w2, wc):
    avg = jnp.mean(x, axis=(2, 3))                        # (B, C)
    mx = jnp.max(x, axis=(2, 3))                          # (B, C)

    def mlp(v):
        h = jnp.maximum(v @ w1.T, 0.0)                    # (B, hid)
        return h @ w2.T                                   # (B, 1)

    ch = jax.nn.sigmoid(mlp(avg) + mlp(mx))               # (B, 1)
    mean_sp = jnp.mean(x, axis=1, keepdims=True)          # (B, 1, H, W)
    max_sp = jnp.max(x, axis=1, keepdims=True)            # (B, 1, H, W)
    sp = jax.nn.sigmoid(wc[0, 0] * mean_sp + wc[0, 1] * max_sp)
    att = ch[:, :, None, None] * sp
    return x * att


def _xavier_normal(key, shape, gain=0.02):
    fan_out, fan_in = shape
    std = gain * math.sqrt(2.0 / (fan_in + fan_out))
    return std * jax.random.normal(key, shape, dtype=jnp.float32)


if __name__ == "__main__":
    B, C, H, W = 2, 16, 16, 16
    ratio = 8
    hid = C // ratio

    key = jax.random.PRNGKey(0)
    k1, k2, k3, kx = jax.random.split(key, 4)

    w1 = _xavier_normal(k1, (hid, C))    # Conv2d(C, C//ratio, 1, bias=False)
    w2 = _xavier_normal(k2, (1, hid))    # Conv2d(C//ratio, 1, 1, bias=False)
    wc = _xavier_normal(k3, (1, 2))      # Conv2d(2, 1, 1, bias=False)

    x = jax.random.normal(kx, (B, C, H, W), dtype=jnp.float32)

    out = jax.block_until_ready(jax.jit(channel_spatial_attention)(x, w1, w2, wc))

    ref = _ref_forward(x, w1, w2, wc)
    assert out.shape == (B, C, H, W)
    assert jnp.allclose(out, ref, atol=1e-4, rtol=1e-4), "mismatch vs reference"

    print("KERNEL_OK")
</pallas_src>

<mosaic_0001>
module attributes {stable_mosaic.version = 11 : i64} {
  func.func @_csa_single_pass_kernel(%arg0: i32, %arg1: memref<1x16x256xf32, #tpu.memory_space<vmem>>, %arg2: memref<16x2xf32, #tpu.memory_space<vmem>>, %arg3: memref<1x2xf32, #tpu.memory_space<vmem>>, %arg4: memref<2xf32, #tpu.memory_space<smem>>, %arg5: memref<1x16x256xf32, #tpu.memory_space<vmem>>) attributes {dimension_semantics = [#tpu.dimension_semantics<parallel>], iteration_bounds = array<i64: 2>, scalar_prefetch = 0 : i64, scratch_operands = 0 : i64, tpu.core_type = #tpu.core_type<tc>, window_params = [{transform_indices = @transform_0, window_bounds = array<i64: 1, 16, 256>}, {pipeline_mode = #tpu.pipeline_mode<synchronous>, transform_indices = @transform_1, window_bounds = array<i64: 16, 2>}, {pipeline_mode = #tpu.pipeline_mode<synchronous>, transform_indices = @transform_2, window_bounds = array<i64: 1, 2>}, {transform_indices = @transform_3, window_bounds = array<i64: 2>}, {transform_indices = @transform_4, window_bounds = array<i64: 1, 16, 256>}]} {
    %c0 = arith.constant 0 : index
    %c0_0 = arith.constant 0 : index
    %c0_1 = arith.constant 0 : index
    %0 = vector.load %arg1[%c0, %c0_0, %c0_1] : memref<1x16x256xf32, #tpu.memory_space<vmem>>, vector<1x16x256xf32>
    %c0_2 = arith.constant 0 : index
    %c0_3 = arith.constant 0 : index
    %1 = vector.load %arg2[%c0_2, %c0_3] : memref<16x2xf32, #tpu.memory_space<vmem>>, vector<16x2xf32>
    %c0_4 = arith.constant 0 : index
    %c0_5 = arith.constant 0 : index
    %2 = vector.load %arg3[%c0_4, %c0_5] : memref<1x2xf32, #tpu.memory_space<vmem>>, vector<1x2xf32>
    %cst = arith.constant 1.000000e+00 : f32
    %3 = vector.broadcast %cst : f32 to vector<1x1x256xf32>
    %cst_6 = arith.constant 1.000000e+00 : f32
    %4 = vector.broadcast %cst_6 : f32 to vector<1x1x16xf32>
    "tpu.trace_start"() <{level = 10 : i32, message = "bkh,bch->bkc"}> : () -> ()
    %cst_7 = arith.constant dense<0.000000e+00> : vector<1x1x16xf32>
    %5 = tpu.matmul %3, %0, %cst_7 {dimension_numbers = #tpu.dot_dimension_numbers<[2], [2], [1], [1], [0, 0, 0, 1, 1, 1], [0], [0]>} : vector<1x1x256xf32>, vector<1x16x256xf32>, vector<1x1x16xf32> -> vector<1x1x16xf32>
    "tpu.trace_stop"() : () -> ()
    %6 = vector.shape_cast %5 : vector<1x1x16xf32> to vector<1x16xf32>
    %cst_8 = arith.constant 3.906250e-03 : f32
    %7 = vector.broadcast %cst_8 : f32 to vector<1x16xf32>
    %8 = arith.mulf %6, %7 : vector<1x16xf32>
    %cst_9 = arith.constant dense<0xFF800000> : vector<1x16xf32>
    %9 = vector.multi_reduction <maximumf>, %0, %cst_9 [2] : vector<1x16x256xf32> to vector<1x16xf32>
    %cst_10 = arith.constant dense<0.000000e+00> : vector<1x2xf32>
    %10 = tpu.matmul %8, %1, %cst_10 {dimension_numbers = #tpu.dot_dimension_numbers<[1], [0], [0], [1], [0, 0, 1, 1], [], []>} : vector<1x16xf32>, vector<16x2xf32>, vector<1x2xf32> -> vector<1x2xf32>
    %cst_11 = arith.constant 0.000000e+00 : f32
    %11 = vector.broadcast %cst_11 : f32 to vector<1x2xf32>
    %12 = arith.maximumf %10, %11 : vector<1x2xf32>
    %13 = arith.mulf %12, %2 : vector<1x2xf32>
    %cst_12 = arith.constant dense<0.000000e+00> : vector<1xf32>
    %14 = vector.multi_reduction <add>, %13, %cst_12 [1] : vector<1x2xf32> to vector<1xf32>
    %15 = vector.shape_cast %14 : vector<1xf32> to vector<1x1xf32>
    %cst_13 = arith.constant dense<0.000000e+00> : vector<1x2xf32>
    %16 = tpu.matmul %9, %1, %cst_13 {dimension_numbers = #tpu.dot_dimension_numbers<[1], [0], [0], [1], [0, 0, 1, 1], [], []>} : vector<1x16xf32>, vector<16x2xf32>, vector<1x2xf32> -> vector<1x2xf32>
    %cst_14 = arith.constant 0.000000e+00 : f32
    %17 = vector.broadcast %cst_14 : f32 to vector<1x2xf32>
    %18 = arith.maximumf %16, %17 : vector<1x2xf32>
    %19 = arith.mulf %18, %2 : vector<1x2xf32>
    %cst_15 = arith.constant dense<0.000000e+00> : vector<1xf32>
    %20 = vector.multi_reduction <add>, %19, %cst_15 [1] : vector<1x2xf32> to vector<1xf32>
    %21 = vector.shape_cast %20 : vector<1xf32> to vector<1x1xf32>
    %22 = arith.addf %15, %21 : vector<1x1xf32>
    %23 = arith.negf %22 : vector<1x1xf32>
    %24 = math.exp %23 : vector<1x1xf32>
    %cst_16 = arith.constant 1.000000e+00 : f32
    %25 = vector.broadcast %cst_16 : f32 to vector<1x1xf32>
    %26 = arith.addf %25, %24 : vector<1x1xf32>
    %27 = arith.divf %25, %26 : vector<1x1xf32>
    "tpu.trace_start"() <{level = 10 : i32, message = "bkc,bch->bkh"}> : () -> ()
    %cst_17 = arith.constant dense<0.000000e+00> : vector<1x1x256xf32>
    %28 = tpu.matmul %4, %0, %cst_17 {dimension_numbers = #tpu.dot_dimension_numbers<[2], [1], [1], [2], [0, 0, 0, 1, 1, 2], [0], [0]>} : vector<1x1x16xf32>, vector<1x16x256xf32>, vector<1x1x256xf32> -> vector<1x1x256xf32>
    "tpu.trace_stop"() : () -> ()
    %cst_18 = arith.constant 6.250000e-02 : f32
    %29 = vector.broadcast %cst_18 : f32 to vector<1x1x256xf32>
    %30 = arith.mulf %28, %29 : vector<1x1x256xf32>
    %cst_19 = arith.constant dense<0xFF800000> : vector<1x256xf32>
    %31 = vector.multi_reduction <maximumf>, %0, %cst_19 [1] : vector<1x16x256xf32> to vector<1x256xf32>
    %32 = vector.shape_cast %31 : vector<1x256xf32> to vector<1x1x256xf32>
    %c0_20 = arith.constant 0 : index
    %33 = memref.load %arg4[%c0_20] : memref<2xf32, #tpu.memory_space<smem>>
    %34 = vector.broadcast %33 : f32 to vector<1x1x256xf32>
    %35 = arith.mulf %34, %30 : vector<1x1x256xf32>
    %c1 = arith.constant 1 : index
    %36 = memref.load %arg4[%c1] : memref<2xf32, #tpu.memory_space<smem>>
    %37 = vector.broadcast %36 : f32 to vector<1x1x256xf32>
    %38 = arith.mulf %37, %32 : vector<1x1x256xf32>
    %39 = arith.addf %35, %38 : vector<1x1x256xf32>
    %40 = arith.negf %39 : vector<1x1x256xf32>
    %41 = math.exp %40 : vector<1x1x256xf32>
    %cst_21 = arith.constant 1.000000e+00 : f32
    %42 = vector.broadcast %cst_21 : f32 to vector<1x1x256xf32>
    %43 = arith.addf %42, %41 : vector<1x1x256xf32>
    %44 = arith.divf %42, %43 : vector<1x1x256xf32>
    %45 = vector.shape_cast %27 : vector<1x1xf32> to vector<1x1x1xf32>
    %46 = vector.broadcast %45 : vector<1x1x1xf32> to vector<1x1x256xf32>
    %47 = arith.mulf %46, %44 : vector<1x1x256xf32>
    %48 = vector.broadcast %47 : vector<1x1x256xf32> to vector<1x16x256xf32>
    %49 = arith.mulf %0, %48 : vector<1x16x256xf32>
    %c0_22 = arith.constant 0 : index
    %c0_23 = arith.constant 0 : index
    %c0_24 = arith.constant 0 : index
    %50 = vector.load %arg5[%c0_22, %c0_23, %c0_24] : memref<1x16x256xf32, #tpu.memory_space<vmem>>, vector<1x16x256xf32>
    tpu.vector_store %arg5[%c0_22, %c0_23, %c0_24], %49 {strides = array<i32>} : memref<1x16x256xf32, #tpu.memory_space<vmem>>, vector<1x16x256xf32>,
    return
  }
  func.func @transform_0(%arg0: i32) -> (i32, i32, i32) {
    %c0_i32 = arith.constant 0 : i32
    %c0_i32_0 = arith.constant 0 : i32
    %c0_i32_1 = arith.constant 0 : i32
    return %arg0, %c0_i32, %c0_i32_0 : i32, i32, i32
  }
  func.func @transform_1(%arg0: i32) -> (i32, i32) {
    %c0_i32 = arith.constant 0 : i32
    %c0_i32_0 = arith.constant 0 : i32
    %c0_i32_1 = arith.constant 0 : i32
    return %c0_i32, %c0_i32_0 : i32, i32
  }
  func.func @transform_2(%arg0: i32) -> (i32, i32) {
    %c0_i32 = arith.constant 0 : i32
    %c0_i32_0 = arith.constant 0 : i32
    %c0_i32_1 = arith.constant 0 : i32
    return %c0_i32, %c0_i32_0 : i32, i32
  }
  func.func @transform_3(%arg0: i32) -> i32 {
    %c0_i32 = arith.constant 0 : i32
    %c0_i32_0 = arith.constant 0 : i32
    return %c0_i32 : i32
  }
  func.func @transform_4(%arg0: i32) -> (i32, i32, i32) {
    %c0_i32 = arith.constant 0 : i32
    %c0_i32_0 = arith.constant 0 : i32
    %c0_i32_1 = arith.constant 0 : i32
    return %arg0, %c0_i32, %c0_i32_0 : i32, i32, i32
  }
}

</mosaic_0001>

<llo_original>
// kernel: channel_spatial_attention.1
$region0: #{channel_spatial_attention.1}
  #allocation0 [shape = 'u32[]', space=smem, size = 0x4, offset = 0x4, fixed_abs, tag = 'smem constant byte address 0x4 - core index']
  #allocation1 [shape = 'u32[144,128]{1,0:T(1,128)}', space=vmem, size = 0x12000, scoped, tag = 'internal scratch']
  %s0 = inlined_call_operand.vmem [shape: f32[2,16,256], index: 0, kind: input, shape index: {}]
  %s1 = inlined_call_operand.vmem [shape: f32[16,2], index: 1, kind: input, shape index: {}]
  %s2 = inlined_call_operand.vmem [shape: f32[1,2], index: 2, kind: input, shape index: {}]
  %s3 = inlined_call_operand.vmem [shape: f32[2], index: 3, kind: input, shape index: {}]
  %s4 = inlined_call_operand.vmem [shape: f32[2,16,256], index: 4, kind: output, shape index: {}]
  %s5 = sld [smem:[#allocation0]]
  $region53: #{channel_spatial_attention.1} parent=0
    _
  %s7 = ssub.s32 1, %s5
  %s8 = scalar_select 0, %s7, %s5
  $region1: #{channel_spatial_attention.1} parent=0
    #allocation2 [shape = 'u8[512]{0}', space=smem, size = 0x200, scoped, tag = 'input window, operand 3, single buffered']
    #allocation3 [shape = 's32[2]{0}', space=sflag, size = 0x8, scoped, tag = 'scoped memory for channel_spatial_attention.1']
    %9 = vsyncpa [#allocation3], 0
    loop: start=0, step=1, limit=4
    $region2: #{channel_spatial_attention.1} parent=1 // loop_pre_header
      _
    $region3: #{channel_spatial_attention.1} parent=1 // loop_header
      %s11 = sphi 0, %s15
      %p12 = scmp.ge.s32.totalorder %s11, 4
      %s21 = sphi 0, %s23
      %s24 = sphi 0, %s21
      %s25 = sphi 0, %s24
      %s41 = sphi 0, %s25
      %s45 = sphi 0, %s45
      %s47 = sphi 0, %s45
      %s48 = sphi 0, %s47
      %s62 = sphi 0, %s48
      %s66 = sphi 0, %s66
      %s68 = sphi 0, %s66
      %s69 = sphi 0, %s68
      %s83 = sphi 0, %s69
      %s87 = sphi 0, %s87
      %s89 = sphi 0, %s87
      %s90 = sphi 0, %s89
      %s104 = sphi 0, %s90
      %s110 = sphi 0, %s112
      %s113 = sphi 0, %s110
      %s114 = sphi 0, %s113
      %s130 = sphi 0, %s114
    $region4: #{channel_spatial_attention.1} parent=1 // loop_header_branch
      %14 = sbr.rel (%p12) target = $region8
    $region5: #{channel_spatial_attention.1} parent=1 // loop_body
      %s16 = ssub.s32 %s11, 1
      %s17 = ssub.s32 %s11, 2
      %s18 = sadd.s32 %s11, 1
      %s19 = ssub.s32 %s11, %s18
      %p20 = scmp.eq.s32.totalorder %s19, 0
      %s22 = sadd.s32 %s21, 1
      %s23 = scalar_select %p20, %s21, %s22
      %p26 = pneg %p20
      %p27 = scmp.eq.s32.totalorder %s11, 1
      %p28 = por %p26, %p27
      %p29 = scmp.ne.s32.totalorder %s21, %s24
      %p30 = scmp.eq.s32.totalorder %s11, 0
      %p31 = por %p29, %p30
      %p32 = scmp.ne.s32.totalorder %s21, %s24
      %p33 = scmp.eq.s32.totalorder %s16, 1
      %p34 = por %p32, %p33
      %p35 = scmp.ne.s32.totalorder %s24, %s25
      %p36 = scmp.eq.s32.totalorder %s16, 0
      %p37 = por %p35, %p36
      %p38 = scmp.ne.s32.totalorder %s24, %s25
      %p39 = scmp.eq.s32.totalorder %s17, 1
      %p40 = por %p38, %p39
      %p42 = scmp.ne.s32.totalorder %s25, %s41
      %p43 = scmp.eq.s32.totalorder %s17, 0
      %p44 = por %p42, %p43
      %s46 = sadd.s32 %s45, 1
      %p49 = scmp.eq.s32.totalorder %s11, 1
      %p50 = scmp.ne.s32.totalorder %s45, %s47
      %p51 = scmp.eq.s32.totalorder %s11, 0
      %p52 = por %p50, %p51
      %p53 = scmp.ne.s32.totalorder %s45, %s47
      %p54 = scmp.eq.s32.totalorder %s16, 1
      %p55 = por %p53, %p54
      %p56 = scmp.ne.s32.totalorder %s47, %s48
      %p57 = scmp.eq.s32.totalorder %s16, 0
      %p58 = por %p56, %p57
      %p59 = scmp.ne.s32.totalorder %s47, %s48
      %p60 = scmp.eq.s32.totalorder %s17, 1
      %p61 = por %p59, %p60
      %p63 = scmp.ne.s32.totalorder %s48, %s62
      %p64 = scmp.eq.s32.totalorder %s17, 0
      %p65 = por %p63, %p64
      %s67 = sadd.s32 %s66, 1
      %p70 = scmp.eq.s32.totalorder %s11, 1
      %p71 = scmp.ne.s32.totalorder %s66, %s68
      %p72 = scmp.eq.s32.totalorder %s11, 0
      %p73 = por %p71, %p72
      %p74 = scmp.ne.s32.totalorder %s66, %s68
      %p75 = scmp.eq.s32.totalorder %s16, 1
      %p76 = por %p74, %p75
      %p77 = scmp.ne.s32.totalorder %s68, %s69
      %p78 = scmp.eq.s32.totalorder %s16, 0
      %p79 = por %p77, %p78
      %p80 = scmp.ne.s32.totalorder %s68, %s69
      %p81 = scmp.eq.s32.totalorder %s17, 1
      %p82 = por %p80, %p81
      %p84 = scmp.ne.s32.totalorder %s69, %s83
      %p85 = scmp.eq.s32.totalorder %s17, 0
      %p86 = por %p84, %p85
      %s88 = sadd.s32 %s87, 1
      %p91 = scmp.eq.s32.totalorder %s11, 1
      %p92 = scmp.ne.s32.totalorder %s87, %s89
      %p93 = scmp.eq.s32.totalorder %s11, 0
      %p94 = por %p92, %p93
      %p95 = scmp.ne.s32.totalorder %s87, %s89
      %p96 = scmp.eq.s32.totalorder %s16, 1
      %p97 = por %p95, %p96
      %p98 = scmp.ne.s32.totalorder %s89, %s90
      %p99 = scmp.eq.s32.totalorder %s16, 0
      %p100 = por %p98, %p99
      %p101 = scmp.ne.s32.totalorder %s89, %s90
      %p102 = scmp.eq.s32.totalorder %s17, 1
      %p103 = por %p101, %p102
      %p105 = scmp.ne.s32.totalorder %s90, %s104
      %p106 = scmp.eq.s32.totalorder %s17, 0
      %p107 = por %p105, %p106
      %s108 = ssub.s32 %s11, %s18
      %p109 = scmp.eq.s32.totalorder %s108, 0
      %s111 = sadd.s32 %s110, 1
      %s112 = scalar_select %p109, %s110, %s111
      %p115 = pneg %p109
      %p116 = scmp.eq.s32.totalorder %s11, 1
      %p117 = por %p115, %p116
      %p118 = scmp.ne.s32.totalorder %s110, %s113
      %p119 = scmp.eq.s32.totalorder %s11, 0
      %p120 = por %p118, %p119
      %p121 = scmp.ne.s32.totalorder %s110, %s113
      %p122 = scmp.eq.s32.totalorder %s16, 1
      %p123 = por %p121, %p122
      %p124 = scmp.ne.s32.totalorder %s113, %s114
      %p125 = scmp.eq.s32.totalorder %s16, 0
      %p126 = por %p124, %p125
      %p127 = scmp.ne.s32.totalorder %s113, %s114
      %p128 = scmp.eq.s32.totalorder %s17, 1
      %p129 = por %p127, %p128
      %p131 = scmp.ne.s32.totalorder %s114, %s130
      %p132 = scmp.eq.s32.totalorder %s17, 0
      %p133 = por %p131, %p132
      %p134 = scmp.le.s32.totalorder 1, %s11
      %p135 = scmp.lt.s32.totalorder %s11, 3
      %p136 = pnand %p134, %p135
      %p137 = pneg %p136
      // Predicated region
      $region9: #{channel_spatial_attention.1} parent=5 // pred_check
        _
      $region10: #{channel_spatial_attention.1} parent=5 // pred_check_branch
        %139 = sbr.rel (%p136) target = $region12
      $region11: #{channel_spatial_attention.1} parent=5 // pred_region
        %s140 = ssub.s32 %s11, 1
        // Predicated region
        $region13: #{channel_spatial_attention.1} parent=11 // pred_check
          %p141 = pneg %p58
        $region14: #{channel_spatial_attention.1} parent=11 // pred_check_branch
          %143 = sbr.rel (%p141) target = $region16
        $region15: #{channel_spatial_attention.1} parent=11 // pred_region
          _
        $region16: #{channel_spatial_attention.1} parent=11 // pred_fallthru
          _
        // Predicated region
        $region17: #{channel_spatial_attention.1} parent=11 // pred_check
          %p144 = pneg %p79
        $region18: #{channel_spatial_attention.1} parent=11 // pred_check_branch
          %146 = sbr.rel (%p144) target = $region20
        $region19: #{channel_spatial_attention.1} parent=11 // pred_region
          _
        $region20: #{channel_spatial_attention.1} parent=11 // pred_fallthru
          _
        // Predicated region
        $region21: #{channel_spatial_attention.1} parent=11 // pred_check
          %p147 = pneg %p100
        $region22: #{channel_spatial_attention.1} parent=11 // pred_check_branch
          %149 = sbr.rel (%p147) target = $region24
        $region23: #{channel_spatial_attention.1} parent=11 // pred_region
          %s151 = ssub.s32 16, 16
          %152 = vsyncadd [#allocation3], %s151
          %s154 = sshll.u32 %s3, 4
          %s155 = int_to_ptr.vmem [resolvable:$true] %s154
          %157 = dma.vmem_to_smem %s155, 16, [#allocation2], [#allocation3]
        $region24: #{channel_spatial_attention.1} parent=11 // pred_fallthru
          _
      $region12: #{channel_spatial_attention.1} parent=5 // pred_fallthru
        _
      %p158 = scmp.lt.s32.totalorder %s11, 2
      // Predicated region
      $region25: #{channel_spatial_attention.1} parent=5 // pred_check
        %p159 = pneg %p158
      $region26: #{channel_spatial_attention.1} parent=5 // pred_check_branch
        %161 = sbr.rel (%p159) target = $region28
      $region27: #{channel_spatial_attention.1} parent=5 // pred_region
        // Predicated region
        $region29: #{channel_spatial_attention.1} parent=27 // pred_check
          %p162 = pneg %p31
        $region30: #{channel_spatial_attention.1} parent=27 // pred_check_branch
          %164 = sbr.rel (%p162) target = $region32
        $region31: #{channel_spatial_attention.1} parent=27 // pred_region
          %p165 = scmp.lt.s32.totalorder %s11, 1
          %s166 = scalar_select %p165, %s11, 1
          %s167 = smul.addr %s166, 4
          %s168 = smul.addr %s167, 8
          %s169 = scalar_lea.vmem %s0, %s168
        $region32: #{channel_spatial_attention.1} parent=27 // pred_fallthru
          _
      $region28: #{channel_spatial_attention.1} parent=5 // pred_fallthru
        _
      %p170 = scmp.le.s32.totalorder 1, %s11
      %p171 = scmp.lt.s32.totalorder %s11, 3
      %p172 = pnand %p170, %p171
      %p173 = pneg %p172
      // Predicated region
      $region33: #{channel_spatial_attention.1} parent=5 // pred_check
        _
      $region34: #{channel_spatial_attention.1} parent=5 // pred_check_branch
        %175 = sbr.rel (%p172) target = $region36
      $region35: #{channel_spatial_attention.1} parent=5 // pred_region
        %s176 = ssub.s32 %s11, 1
        // Predicated region
        $region37: #{channel_spatial_attention.1} parent=35 // pred_check
          %p177 = pneg %p100
        $region38: #{channel_spatial_attention.1} parent=35 // pred_check_branch
          %179 = sbr.rel (%p177) target = $region40
        $region39: #{channel_spatial_attention.1} parent=35 // pred_region
          %180 = dma.done [#allocation3], 16
        $region40: #{channel_spatial_attention.1} parent=35 // pred_fallthru
          _
        %181 = sfence
        %p182 = scmp.lt.s32.totalorder %s16, 1
        %s183 = scalar_select %p182, %s16, 1
        %s184 = smul.addr %s183, 4
        %s185 = smul.addr %s184, 8
        %s186 = scalar_lea.vmem %s0, %s185
        %p187 = pneg %p37
        %p188 = pneg %p34
        %p189 = pneg %p58
        %p190 = pneg %p55
        %p191 = pneg %p79
        %p192 = pneg %p76
        %p193 = pneg %p100
        %p194 = pneg %p97
        %p195 = pneg %p126
        %p196 = pneg %p123
        %p197 = scmp.lt.s32.totalorder %s16, 1
        %s198 = scalar_select %p197, %s16, 1
        %s199 = smul.addr %s198, 4
        %s200 = smul.addr %s199, 8
        %s201 = scalar_lea.vmem %s4, %s200
        %p202 = scmp.lt.s32.totalorder %s16, 1
        %s203 = scalar_select %p202, %s16, 1
        %s204 = smul.addr %s203, 4
        %s205 = smul.addr %s204, 8
        %s206 = scalar_lea.vmem %s0, %s205
        %p207 = scmp.lt.s32.totalorder %s16, 1
        %s208 = scalar_select %p207, %s16, 1
        %s209 = smul.addr %s208, 4
        %s210 = smul.addr %s209, 8
        %s211 = scalar_lea.vmem %s4, %s210
        %v212 = vld [vmem:[%s206] sm:$0xff]
        %v213 = vld [vmem:[%s206 + $0x8] sm:$0xff]
        %v214 = vld [vmem:[%s206 + $0x10] sm:$0xff]
        %v215 = vld [vmem:[%s206 + $0x18] sm:$0xff]
        %v216 = vld [vmem:[%s1] sm:$0xff]
        %v217 = vld [vmem:[%s1 + $0x8] sm:$0xff]
        %v218 = vld [vmem:[%s2] sm:$0x1]
        %219 = vmatprep.subr.mxu0 0.0
        %220 = vmatpush1.xpose.msra.mxu0 0.0
        %221 = vmatprep.subr.mxu0 0.0
        %222 = vmatpush1.xpose.msra.mxu0 0.0
        %223 = vmatprep.subr.mxu0 0.0
        %224 = vmatpush1.xpose.msra.mxu0 0.0
        %225 = vmatprep.subr.mxu0 0.0
        %226 = vmatpush1.xpose.msra.mxu0 0.0
        %227 = vmatprep.subr.mxu0 0.0
        %228 = vmatpush1.xpose.msra.mxu0 0.0
        %229 = vmatprep.subr.mxu0 0.0
        %230 = vmatpush1.xpose.msra.mxu0 0.0
        %231 = vmatprep.subr.mxu0 0.0
        %232 = vmatpush1.xpose.msra.mxu0 0.0
        %233 = vmatprep.subr.mxu0 0.0
        %234 = vmatpush1.xpose.msra.mxu0 0.0
        %235 = vmatprep.subr.mxu0 0.0
        %236 = vmatpush1.xpose.msra.mxu0 0.0
        %237 = vmatprep.subr.mxu0 0.0
        %238 = vmatpush1.xpose.msra.mxu0 0.0
        %239 = vmatprep.subr.mxu0 0.0
        %240 = vmatpush1.xpose.msra.mxu0 0.0
        %241 = vmatprep.subr.mxu0 0.0
        %242 = vmatpush1.xpose.msra.mxu0 0.0
        %243 = vmatprep.subr.mxu0 0.0
        %244 = vmatpush1.xpose.msra.mxu0 0.0
        %245 = vmatprep.subr.mxu0 0.0
        %246 = vmatpush1.xpose.msra.mxu0 0.0
        %247 = vmatprep.subr.mxu0 %v215
        %248 = vmatpush1.xpose.msra.mxu0 %v214
        %249 = vmatprep.subr.mxu0 %v213
        %250 = vmatpush1.xpose.msra.mxu0 %v212
        %251 = vmatprep.subr.mxu0 0.0
        %252 = vmatpush2.xpose.msra.mxu0 0.0
        %253 = vmatprep.subr.mxu0 0.0
        %254 = vmatpush2.xpose.msra.mxu0 0.0
        %255 = vmatprep.subr.mxu0 0.0
        %256 = vmatpush2.xpose.msra.mxu0 0.0
        %257 = vmatprep.subr.mxu0 0.0
        %258 = vmatpush2.xpose.msra.mxu0 0.0
        %259 = vmatprep.subr.mxu0 0.0
        %260 = vmatpush2.xpose.msra.mxu0 0.0
        %261 = vmatprep.subr.mxu0 0.0
        %262 = vmatpush2.xpose.msra.mxu0 0.0
        %263 = vmatprep.subr.mxu0 0.0
        %264 = vmatpush2.xpose.msra.mxu0 0.0
        %265 = vmatprep.subr.mxu0 0.0
        %266 = vmatpush2.xpose.msra.mxu0 0.0
        %267 = vmatprep.subr.mxu0 0.0
        %268 = vmatpush2.xpose.msra.mxu0 0.0
        %269 = vmatprep.subr.mxu0 0.0
        %270 = vmatpush2.xpose.msra.mxu0 0.0
        %271 = vmatprep.subr.mxu0 0.0
        %272 = vmatpush2.xpose.msra.mxu0 0.0
        %273 = vmatprep.subr.mxu0 0.0
        %274 = vmatpush2.xpose.msra.mxu0 0.0
        %275 = vmatprep.subr.mxu0 0.0
        %276 = vmatpush2.xpose.msra.mxu0 0.0
        %277 = vmatprep.subr.mxu0 0.0
        %278 = vmatpush2.xpose.msra.mxu0 0.0
        %279 = vmatprep.subr.mxu0 0.0
        %280 = vmatpush2.xpose.msra.mxu0 0.0
        %281 = vmatprep.subr.mxu0 0.0
        %282 = vmatpush2.xpose.msra.mxu0 0.0
        %283 = vmatprep.mubr.f32.mxu0 1.0
        %284 = vmatmul.mubr.f32.gmra.mxu0 1.0
        %v285 = vpop.f32.mrf.mxu0
        %v286 = vadd.f32 0.0, %v285
        %v287 = vpop.f32.mrf.mxu0
        %288 = vdwg.mxu0
        %v289 = vmul.f32 %v286, 0.00390625
        %v290 = vmax.f32 %v212, %v213
        %291 = vmax.xlane.f32.xlu0 %v290
        %v292 = vpop.xlane.xlu0 %291
        %v293 = vmax.f32 %v214, %v215
        %294 = vmax.xlane.f32.xlu0 %v293
        %v295 = vpop.xlane.xlu0 %294
        %vm296 = vcmask 130048
        %v298 = vsel %vm296, %v289, 0
        %300 = vmatprep.subr.mxu0 0.0
        %301 = vmatpush1.msra.mxu0 0.0
        %302 = vmatprep.subr.mxu0 0.0
        %303 = vmatpush1.msra.mxu0 0.0
        %304 = vmatprep.subr.mxu0 0.0
        %305 = vmatpush1.msra.mxu0 0.0
        %306 = vmatprep.subr.mxu0 0.0
        %307 = vmatpush1.msra.mxu0 0.0
        %308 = vmatprep.subr.mxu0 0.0
        %309 = vmatpush1.msra.mxu0 0.0
        %310 = vmatprep.subr.mxu0 0.0
        %311 = vmatpush1.msra.mxu0 0.0
        %312 = vmatprep.subr.mxu0 0.0
        %313 = vmatpush1.msra.mxu0 0.0
        %314 = vmatprep.subr.mxu0 0.0
        %315 = vmatpush1.msra.mxu0 0.0
        %316 = vmatprep.subr.mxu0 0.0
        %317 = vmatpush1.msra.mxu0 0.0
        %318 = vmatprep.subr.mxu0 0.0
        %319 = vmatpush1.msra.mxu0 0.0
        %320 = vmatprep.subr.mxu0 0.0
        %321 = vmatpush1.msra.mxu0 0.0
        %322 = vmatprep.subr.mxu0 0.0
        %323 = vmatpush1.msra.mxu0 0.0
        %324 = vmatprep.subr.mxu0 0.0
        %325 = vmatpush1.msra.mxu0 0.0
        %326 = vmatprep.subr.mxu0 0.0
        %327 = vmatpush1.msra.mxu0 0.0
        %328 = vmatprep.subr.mxu0 0.0
        %329 = vmatpush1.msra.mxu0 %v217
        %330 = vmatprep.subr.mxu0 0.0
        %331 = vmatpush1.msra.mxu0 %v216
        %332 = vmatprep.subr.mxu0 0.0
        %333 = vmatpush2.msra.mxu0 0.0
        %334 = vmatprep.subr.mxu0 0.0
        %335 = vmatpush2.msra.mxu0 0.0
        %336 = vmatprep.subr.mxu0 0.0
        %337 = vmatpush2.msra.mxu0 0.0
        %338 = vmatprep.subr.mxu0 0.0
        %339 = vmatpush2.msra.mxu0 0.0
        %340 = vmatprep.subr.mxu0 0.0
        %341 = vmatpush2.msra.mxu0 0.0
        %342 = vmatprep.subr.mxu0 0.0
        %343 = vmatpush2.msra.mxu0 0.0
        %344 = vmatprep.subr.mxu0 0.0
        %345 = vmatpush2.msra.mxu0 0.0
        %346 = vmatprep.subr.mxu0 0.0
        %347 = vmatpush2.msra.mxu0 0.0
        %348 = vmatprep.subr.mxu0 0.0
        %349 = vmatpush2.msra.mxu0 0.0
        %350 = vmatprep.subr.mxu0 0.0
        %351 = vmatpush2.msra.mxu0 0.0
        %352 = vmatprep.subr.mxu0 0.0
        %353 = vmatpush2.msra.mxu0 0.0
        %354 = vmatprep.subr.mxu0 0.0
        %355 = vmatpush2.msra.mxu0 0.0
        %356 = vmatprep.subr.mxu0 0.0
        %357 = vmatpush2.msra.mxu0 0.0
        %358 = vmatprep.subr.mxu0 0.0
        %359 = vmatpush2.msra.mxu0 0.0
        %360 = vmatprep.subr.mxu0 0.0
        %361 = vmatpush2.msra.mxu0 0.0
        %362 = vmatprep.subr.mxu0 0.0
        %363 = vmatpush2.msra.mxu0 0.0
        %364 = vmatprep.mubr.f32.mxu0 0.0
        %365 = vmatmul.mubr.f32.gmra.mxu0 %v298
        %v366 = vpop.f32.mrf.mxu0
        %v367 = vadd.f32 0.0, %v366
        %v368 = vpop.f32.mrf.mxu0
        %369 = vdwg.mxu0
        %v370 = vmax.f32 %v367, 0.0
        %v371 = vmul.f32 %v370, %v218
        %vm372 = vcmask 8192
        %v373 = vsel %vm372, %v371, 0.0
        %374 = vadd.xlane.f32.xlu0 %v373
        %v375 = vpop.xlane.xlu0 %374
        %v378 = vlaneseq
        %v379 = vand.u32 %v378, 127
        %v380 = vlaneseq
        %v381 = vshrl.u32 %v380, 7
        %v382 = vsub.s32 %v379, %v381
        %v383 = vrot.slane %v292, %v382
        %v384 = vadd.s32 %v379, 4294967288
        %v385 = vlaneseq
        %v386 = vshrl.u32 %v385, 7
        %v387 = vsub.s32 %v384, %v386
        %v388 = vrot.slane %v295, %v387
        %vm389 = vcmask 130112
        %v390 = vsel %vm389, %v388, %v383
        %v391 = vsel %vm296, %v390, 0
        %393 = vmatprep.subr.mxu0 0.0
        %394 = vmatpush1.msra.mxu0 0.0
        %395 = vmatprep.subr.mxu0 0.0
        %396 = vmatpush1.msra.mxu0 0.0
        %397 = vmatprep.subr.mxu0 0.0
        %398 = vmatpush1.msra.mxu0 0.0
        %399 = vmatprep.subr.mxu0 0.0
        %400 = vmatpush1.msra.mxu0 0.0
        %401 = vmatprep.subr.mxu0 0.0
        %402 = vmatpush1.msra.mxu0 0.0
        %403 = vmatprep.subr.mxu0 0.0
        %404 = vmatpush1.msra.mxu0 0.0
        %405 = vmatprep.subr.mxu0 0.0
        %406 = vmatpush1.msra.mxu0 0.0
        %407 = vmatprep.subr.mxu0 0.0
        %408 = vmatpush1.msra.mxu0 0.0
        %409 = vmatprep.subr.mxu0 0.0
        %410 = vmatpush1.msra.mxu0 0.0
        %411 = vmatprep.subr.mxu0 0.0
        %412 = vmatpush1.msra.mxu0 0.0
        %413 = vmatprep.subr.mxu0 0.0
        %414 = vmatpush1.msra.mxu0 0.0
        %415 = vmatprep.subr.mxu0 0.0
        %416 = vmatpush1.msra.mxu0 0.0
        %417 = vmatprep.subr.mxu0 0.0
        %418 = vmatpush1.msra.mxu0 0.0
        %419 = vmatprep.subr.mxu0 0.0
        %420 = vmatpush1.msra.mxu0 0.0
        %421 = vmatprep.subr.mxu0 0.0
        %422 = vmatpush1.msra.mxu0 %v217
        %423 = vmatprep.subr.mxu0 0.0
        %424 = vmatpush1.msra.mxu0 %v216
        %425 = vmatprep.subr.mxu0 0.0
        %426 = vmatpush2.msra.mxu0 0.0
        %427 = vmatprep.subr.mxu0 0.0
        %428 = vmatpush2.msra.mxu0 0.0
        %429 = vmatprep.subr.mxu0 0.0
        %430 = vmatpush2.msra.mxu0 0.0
        %431 = vmatprep.subr.mxu0 0.0
        %432 = vmatpush2.msra.mxu0 0.0
        %433 = vmatprep.subr.mxu0 0.0
        %434 = vmatpush2.msra.mxu0 0.0
        %435 = vmatprep.subr.mxu0 0.0
        %436 = vmatpush2.msra.mxu0 0.0
        %437 = vmatprep.subr.mxu0 0.0
        %438 = vmatpush2.msra.mxu0 0.0
        %439 = vmatprep.subr.mxu0 0.0
        %440 = vmatpush2.msra.mxu0 0.0
        %441 = vmatprep.subr.mxu0 0.0
        %442 = vmatpush2.msra.mxu0 0.0
        %443 = vmatprep.subr.mxu0 0.0
        %444 = vmatpush2.msra.mxu0 0.0
        %445 = vmatprep.subr.mxu0 0.0
        %446 = vmatpush2.msra.mxu0 0.0
        %447 = vmatprep.subr.mxu0 0.0
        %448 = vmatpush2.msra.mxu0 0.0
        %449 = vmatprep.subr.mxu0 0.0
        %450 = vmatpush2.msra.mxu0 0.0
        %451 = vmatprep.subr.mxu0 0.0
        %452 = vmatpush2.msra.mxu0 0.0
        %453 = vmatprep.subr.mxu0 0.0
        %454 = vmatpush2.msra.mxu0 0.0
        %455 = vmatprep.subr.mxu0 0.0
        %456 = vmatpush2.msra.mxu0 0.0
        %457 = vmatprep.mubr.f32.mxu0 0.0
        %458 = vmatmul.mubr.f32.gmra.mxu0 %v391
        %v459 = vpop.f32.mrf.mxu0
        %v460 = vadd.f32 0.0, %v459
        %v461 = vpop.f32.mrf.mxu0
        %462 = vdwg.mxu0
        %v463 = vmax.f32 %v460, 0.0
        %v464 = vmul.f32 %v463, %v218
        %v465 = vsel %vm372, %v464, 0.0
        %466 = vadd.xlane.f32.xlu0 %v465
        %v467 = vpop.xlane.xlu0 %466
        %v468 = vadd.f32 %v375, %v467
        %v469 = vxor.u32 %v468, 2147483648
        %v470 = vmul.f32 %v469, 1.442695
        %v471 = vpow.pop %v470
        %v472 = vadd.f32 %v471, 1.0
        %v473 = vrcp.pop %v472
        %v474 = vmul.f32 1.0, %v473
        %v476 = vsel %vm296, 1.0, 0
        %478 = vmatprep.subr.mxu0 0.0
        %479 = vmatpush1.msra.mxu0 0.0
        %480 = vmatprep.subr.mxu0 0.0
        %481 = vmatpush1.msra.mxu0 0.0
        %482 = vmatprep.subr.mxu0 0.0
        %483 = vmatpush1.msra.mxu0 0.0
        %484 = vmatprep.subr.mxu0 0.0
        %485 = vmatpush1.msra.mxu0 0.0
        %486 = vmatprep.subr.mxu0 0.0
        %487 = vmatpush1.msra.mxu0 0.0
        %488 = vmatprep.subr.mxu0 0.0
        %489 = vmatpush1.msra.mxu0 0.0
        %490 = vmatprep.subr.mxu0 0.0
        %491 = vmatpush1.msra.mxu0 0.0
        %492 = vmatprep.subr.mxu0 0.0
        %493 = vmatpush1.msra.mxu0 0.0
        %494 = vmatprep.subr.mxu0 0.0
        %495 = vmatpush1.msra.mxu0 0.0
        %496 = vmatprep.subr.mxu0 0.0
        %497 = vmatpush1.msra.mxu0 0.0
        %498 = vmatprep.subr.mxu0 0.0
        %499 = vmatpush1.msra.mxu0 0.0
        %500 = vmatprep.subr.mxu0 0.0
        %501 = vmatpush1.msra.mxu0 0.0
        %502 = vmatprep.subr.mxu0 0.0
        %503 = vmatpush1.msra.mxu0 0.0
        %504 = vmatprep.subr.mxu0 0.0
        %505 = vmatpush1.msra.mxu0 0.0
        %506 = vmatprep.subr.mxu0 %v215
        %507 = vmatpush1.msra.mxu0 %v214
        %508 = vmatprep.subr.mxu0 %v213
        %509 = vmatpush1.msra.mxu0 %v212
        %510 = vmatprep.subr.mxu0 0.0
        %511 = vmatpush2.msra.mxu0 0.0
        %512 = vmatprep.subr.mxu0 0.0
        %513 = vmatpush2.msra.mxu0 0.0
        %514 = vmatprep.subr.mxu0 0.0
        %515 = vmatpush2.msra.mxu0 0.0
        %516 = vmatprep.subr.mxu0 0.0
        %517 = vmatpush2.msra.mxu0 0.0
        %518 = vmatprep.subr.mxu0 0.0
        %519 = vmatpush2.msra.mxu0 0.0
        %520 = vmatprep.subr.mxu0 0.0
        %521 = vmatpush2.msra.mxu0 0.0
        %522 = vmatprep.subr.mxu0 0.0
        %523 = vmatpush2.msra.mxu0 0.0
        %524 = vmatprep.subr.mxu0 0.0
        %525 = vmatpush2.msra.mxu0 0.0
        %526 = vmatprep.subr.mxu0 0.0
        %527 = vmatpush2.msra.mxu0 0.0
        %528 = vmatprep.subr.mxu0 0.0
        %529 = vmatpush2.msra.mxu0 0.0
        %530 = vmatprep.subr.mxu0 0.0
        %531 = vmatpush2.msra.mxu0 0.0
        %532 = vmatprep.subr.mxu0 0.0
        %533 = vmatpush2.msra.mxu0 0.0
        %534 = vmatprep.subr.mxu0 0.0
        %535 = vmatpush2.msra.mxu0 0.0
        %536 = vmatprep.subr.mxu0 0.0
        %537 = vmatpush2.msra.mxu0 0.0
        %538 = vmatprep.subr.mxu0 0.0
        %539 = vmatpush2.msra.mxu0 0.0
        %540 = vmatprep.subr.mxu0 0.0
        %541 = vmatpush2.msra.mxu0 0.0
        %542 = vmatprep.mubr.f32.mxu0 0.0
        %543 = vmatmul.mubr.f32.gmra.mxu0 %v476
        %v544 = vpop.f32.mrf.mxu0
        %v545 = vadd.f32 0.0, %v544
        %v546 = vpop.f32.mrf.mxu0
        %v547 = vadd.f32 0.0, %v546
        %548 = vdwg.mxu0
        %v549 = vmul.f32 %v545, 0.0625
        %v550 = vmul.f32 %v547, 0.0625
        %v551 = vmax.f32 %v212, %v214
        %v552 = vrot.slane %v551, 4
        %v553 = vmax.f32 %v551, %v552
        %v554 = vrot.slane %v553, 2
        %v555 = vmax.f32 %v553, %v554
        %v556 = vrot.slane %v555, 1
        %v557 = vmax.f32 %v555, %v556
        %v558 = vmax.f32 %v213, %v215
        %v559 = vrot.slane %v558, 4
        %v560 = vmax.f32 %v558, %v559
        %v561 = vrot.slane %v560, 2
        %v562 = vmax.f32 %v560, %v561
        %v563 = vrot.slane %v562, 1
        %v564 = vmax.f32 %v562, %v563
        %s565 = sld [smem:[#allocation2]]
        %v566 = vstv %s565
        %v567 = vmul.f32 %v566, %v549
        %v568 = vmul.f32 %v566, %v550
        %s569 = sld [smem:[#allocation2 + $0x1]]
        %v570 = vstv %s569
        %v571 = vmul.f32 %v570, %v557
        %v572 = vmul.f32 %v570, %v564
        %v573 = vadd.f32 %v567, %v571
        %v574 = vadd.f32 %v568, %v572
        %v575 = vxor.u32 %v573, 2147483648
        %v576 = vxor.u32 %v574, 2147483648
        %v577 = vmul.f32 %v575, 1.442695
        %v578 = vpow.pop %v577
        %v579 = vmul.f32 %v576, 1.442695
        %v580 = vpow.pop %v579
        %v581 = vadd.f32 %v578, 1.0
        %v582 = vadd.f32 %v580, 1.0
        %v583 = vrcp.pop %v581
        %v584 = vmul.f32 1.0, %v583
        %v585 = vrcp.pop %v582
        %v586 = vmul.f32 1.0, %v585
        %v587 = vmul.f32 %v474, %v584
        %v588 = vmul.f32 %v474, %v586
        %v589 = vlaneseq
        %v590 = vshrl.u32 %v589, 7
        %v591 = vsub.s32 0, %v590
        %v592 = vrot.slane %v587, %v591
        %v593 = vlaneseq
        %v594 = vshrl.u32 %v593, 7
        %v595 = vsub.s32 0, %v594
        %v596 = vrot.slane %v588, %v595
        %v597 = vmul.f32 %v212, %v592
        %v598 = vmul.f32 %v213, %v596
        %v599 = vmul.f32 %v214, %v592
        %v600 = vmul.f32 %v215, %v596
        %601 = vst [vmem:[%s211] sm:$0xff] %v597
        %602 = vst [vmem:[%s211 + $0x8] sm:$0xff] %v598
        %603 = vst [vmem:[%s211 + $0x10] sm:$0xff] %v599
        %604 = vst [vmem:[%s211 + $0x18] sm:$0xff] %v600
        %p605 = scmp.lt.s32.totalorder %s16, 1
        %s606 = scalar_select %p605, %s16, 1
        %s607 = smul.addr %s606, 4
        %s608 = smul.addr %s607, 8
        %s609 = scalar_lea.vmem %s4, %s608
        // Predicated region
        $region41: #{channel_spatial_attention.1} parent=35 // pred_check
          %p610 = pneg %p123
        $region42: #{channel_spatial_attention.1} parent=35 // pred_check_branch
          %612 = sbr.rel (%p610) target = $region44
        $region43: #{channel_spatial_attention.1} parent=35 // pred_region
          _
        $region44: #{channel_spatial_attention.1} parent=35 // pred_fallthru
          _
      $region36: #{channel_spatial_attention.1} parent=5 // pred_fallthru
        _
      %p613 = scmp.le.s32.totalorder 2, %s11
      // Predicated region
      $region45: #{channel_spatial_attention.1} parent=5 // pred_check
        %p614 = pneg %p613
      $region46: #{channel_spatial_attention.1} parent=5 // pred_check_branch
        %616 = sbr.rel (%p614) target = $region48
      $region47: #{channel_spatial_attention.1} parent=5 // pred_region
        %s617 = ssub.s32 %s11, 2
        // Predicated region
        $region49: #{channel_spatial_attention.1} parent=47 // pred_check
          %p618 = pneg %p129
        $region50: #{channel_spatial_attention.1} parent=47 // pred_check_branch
          %620 = sbr.rel (%p618) target = $region52
        $region51: #{channel_spatial_attention.1} parent=47 // pred_region
          %p621 = scmp.lt.s32.totalorder %s17, 1
          %s622 = scalar_select %p621, %s17, 1
          %s623 = smul.addr %s622, 4
          %s624 = smul.addr %s623, 8
          %s625 = scalar_lea.vmem %s4, %s624
        $region52: #{channel_spatial_attention.1} parent=47 // pred_fallthru
          _
      $region48: #{channel_spatial_attention.1} parent=5 // pred_fallthru
        _
    $region6: #{channel_spatial_attention.1} parent=1 // loop_footer
      %s15 = sadd.s32 1, %s11
    $region7: #{channel_spatial_attention.1} parent=1 // loop_footer_branch
      %10 = sbr.rel target = $region3
    $region8: #{channel_spatial_attention.1} parent=1 // loop_exit
      _
    %626 = vsyncpa [#allocation3], 1
    %s627 = scalar_lea.sflag [#allocation3], 1
    %628 = vsyncpa %s627, 1

</llo_original>
